<compile_context>
chip_gen: v5e
topology: v5e:2x2
jax: 0.10.0
libtpu: 0.0.40
codegen_flags: <defaults>
</compile_context>

<pallas_src>
import functools

import jax
import jax.numpy as jnp
from jax.experimental import pallas as pl
from jax.experimental.pallas import tpu as pltpu


def _round_up(x, m):
    return (x + m - 1) // m * m


def dqn_kernel(x_ref, w1_ref, b1_ref, w2_ref, b2_ref, w3_ref, b3_ref, o_ref):
    # In-kernel cast of x to the weight compute dtype (bf16 on the default path).
    # No-op when weights are f32. Keeps the x HBM stream at its native width.
    x = x_ref[...].astype(w1_ref.dtype)
    # fc1 + relu  (MXU matmul, f32 accumulate; epilogue in f32)
    h = jnp.dot(x, w1_ref[...], preferred_element_type=jnp.float32)
    h = jnp.maximum(h + b1_ref[...], 0.0).astype(w2_ref.dtype)
    # fc2 + relu
    h = jnp.dot(h, w2_ref[...], preferred_element_type=jnp.float32)
    h = jnp.maximum(h + b2_ref[...], 0.0).astype(w3_ref.dtype)
    # fc3 (no activation): unpadded (tb, out_dim) store -> masked vst, minimal HBM write
    o = jnp.dot(h, w3_ref[...], preferred_element_type=jnp.float32)
    o_ref[...] = (o + b3_ref[...]).astype(o_ref.dtype)


@functools.partial(jax.jit, static_argnames=("block_batch", "use_bf16"))
def dq_network_forward(x, params, *, block_batch=2048, use_bf16=True):
    """Forward pass of DQNetwork.

    x: (batch, input_dim) float32.
    params: dict with transposed weights w1/w2/w3 (in, out) and biases b1/b2/b3 (1, out).
    block_batch: max rows per grid step (rounded down to a multiple of 8).
                 Sweep 1024-4096; VMEM footprint is a few MiB even at 4096, so VMEM is
                 not the binding constraint on any generation. tb is additionally capped
                 so the grid has >= 2 steps (keeps both v7x TensorCores busy).
    use_bf16: use bf16 weights + in-kernel bf16 x cast on the native MXU path
              (f32 accumulation). False -> full f32 path.
    """
    w1, b1, w2, b2, w3, b3 = (
        params["w1"], params["b1"], params["w2"],
        params["b2"], params["w3"], params["b3"],
    )
    batch, input_dim = x.shape
    hidden = w1.shape[1]
    out_dim = w3.shape[1]

    # --- batch tile selection: no wrapper-side pad or slice. Pallas masks the ragged
    # last block (block sublane dim is a multiple of 8, so the (8,128) rule holds).
    bb = max(8, (int(block_batch) // 8) * 8)
    if batch <= 8:
        tb = batch                                          # one block == full batch
    else:
        tb = min(bb, _round_up(pl.cdiv(batch, 2), 8))       # aim for >= 2 grid steps
    grid = (pl.cdiv(batch, tb),)

    # One-time weight casts (weights are tiny and VMEM-resident across all tiles).
    wdt = jnp.bfloat16 if use_bf16 else jnp.float32
    w1_c, w2_c, w3_c = w1.astype(wdt), w2.astype(wdt), w3.astype(wdt)
    b1_f, b2_f, b3_f = (b.astype(jnp.float32) for b in (b1, b2, b3))

    flops = 2 * batch * (input_dim * hidden + hidden * hidden + hidden * out_dim)
    bytes_accessed = (
        batch * input_dim * x.dtype.itemsize                                     # x read
        + (input_dim * hidden + hidden * hidden + hidden * out_dim) * jnp.dtype(wdt).itemsize
        + (2 * hidden + out_dim) * 4                                             # biases
        + batch * out_dim * 4                                                    # out write
    )
    cost = pl.CostEstimate(flops=flops, transcendentals=0, bytes_accessed=bytes_accessed)

    const2 = lambda i: (0, 0)  # weights/biases: same block every step -> VMEM-resident

    out = pl.pallas_call(
        dqn_kernel,
        out_shape=jax.ShapeDtypeStruct((batch, out_dim), jnp.float32),
        grid=grid,
        in_specs=[
            pl.BlockSpec((tb, input_dim), lambda i: (i, 0)),  # x: streamed per tile
            pl.BlockSpec((input_dim, hidden), const2),        # w1
            pl.BlockSpec((1, hidden), const2),                # b1
            pl.BlockSpec((hidden, hidden), const2),           # w2
            pl.BlockSpec((1, hidden), const2),                # b2
            pl.BlockSpec((hidden, out_dim), const2),          # w3
            pl.BlockSpec((1, out_dim), const2),               # b3
        ],
        out_specs=pl.BlockSpec((tb, out_dim), lambda i: (i, 0)),
        compiler_params=pltpu.CompilerParams(
            dimension_semantics=("parallel",),  # shard batch tiles across TCs on v7x
        ),
        cost_estimate=cost,
    )(x, w1_c, b1_f, w2_c, b2_f, w3_c, b3_f)

    return out


def init_params(key, input_dim, output_dim, hidden=128):
    """Deterministic init mirroring nn.Linear default: U(-1/sqrt(fan_in), 1/sqrt(fan_in)).
    Weights are stored TRANSPOSED (in, out) relative to PyTorch's (out, in)."""
    keys = jax.random.split(key, 6)

    def linear(kw, kb, fan_in, fan_out):
        bound = 1.0 / jnp.sqrt(jnp.float32(fan_in))
        w = jax.random.uniform(kw, (fan_in, fan_out), jnp.float32, -bound, bound)
        b = jax.random.uniform(kb, (1, fan_out), jnp.float32, -bound, bound)
        return w, b

    w1, b1 = linear(keys[0], keys[1], input_dim, hidden)
    w2, b2 = linear(keys[2], keys[3], hidden, hidden)
    w3, b3 = linear(keys[4], keys[5], hidden, output_dim)
    return {"w1": w1, "b1": b1, "w2": w2, "b2": b2, "w3": w3, "b3": b3}


def reference_forward(x, params):
    hp = jax.lax.Precision.HIGHEST  # true f32 oracle (no implicit bf16 MXU passes)
    h = jnp.maximum(jnp.dot(x, params["w1"], precision=hp) + params["b1"], 0.0)
    h = jnp.maximum(jnp.dot(h, params["w2"], precision=hp) + params["b2"], 0.0)
    return jnp.dot(h, params["w3"], precision=hp) + params["b3"]


if __name__ == "__main__":
    key = jax.random.PRNGKey(0)
    k_param, k_x = jax.random.split(key)

    batch, input_dim, output_dim = 8, 16, 8   # small DQN-style state/action dims
    params = init_params(k_param, input_dim, output_dim)
    x = jax.random.normal(k_x, (batch, input_dim), jnp.float32)

    ref = reference_forward(x, params)

    # f32 path vs HIGHEST-precision reference
    out_f32 = jax.block_until_ready(dq_network_forward(x, params, use_bf16=False))
    assert out_f32.shape == (batch, output_dim)
    assert jnp.allclose(out_f32, ref, atol=1e-3, rtol=1e-3), float(jnp.max(jnp.abs(out_f32 - ref)))

    # bf16 MXU path (default): loose tolerance
    out_bf16 = jax.block_until_ready(dq_network_forward(x, params, use_bf16=True))
    assert out_bf16.shape == (batch, output_dim)
    assert jnp.allclose(out_bf16, ref, atol=5e-2, rtol=5e-2), float(jnp.max(jnp.abs(out_bf16 - ref)))

    # Exercise the ragged-last-block path (batch not a multiple of the tile).
    xr = jax.random.normal(jax.random.PRNGKey(1), (13, input_dim), jnp.float32)
    out_r = jax.block_until_ready(dq_network_forward(xr, params))
    assert out_r.shape == (13, output_dim)
    assert jnp.allclose(out_r, reference_forward(xr, params), atol=5e-2, rtol=5e-2)

    print("KERNEL_OK")
</pallas_src>

<mosaic_0001>
module attributes {stable_mosaic.version = 11 : i64} {
  func.func @dqn_kernel(%arg0: i32, %arg1: memref<8x16xf32, #tpu.memory_space<vmem>>, %arg2: memref<16x128xf32, #tpu.memory_space<vmem>>, %arg3: memref<1x128xf32, #tpu.memory_space<vmem>>, %arg4: memref<128x128xf32, #tpu.memory_space<vmem>>, %arg5: memref<1x128xf32, #tpu.memory_space<vmem>>, %arg6: memref<128x8xf32, #tpu.memory_space<vmem>>, %arg7: memref<1x8xf32, #tpu.memory_space<vmem>>, %arg8: memref<8x8xf32, #tpu.memory_space<vmem>>) attributes {dimension_semantics = [#tpu.dimension_semantics<parallel>], iteration_bounds = array<i64: 1>, scalar_prefetch = 0 : i64, scratch_operands = 0 : i64, tpu.core_type = #tpu.core_type<tc>, window_params = [{transform_indices = @transform_0, window_bounds = array<i64: 8, 16>}, {pipeline_mode = #tpu.pipeline_mode<synchronous>, transform_indices = @transform_1, window_bounds = array<i64: 16, 128>}, {pipeline_mode = #tpu.pipeline_mode<synchronous>, transform_indices = @transform_2, window_bounds = array<i64: 1, 128>}, {pipeline_mode = #tpu.pipeline_mode<synchronous>, transform_indices = @transform_3, window_bounds = array<i64: 128, 128>}, {pipeline_mode = #tpu.pipeline_mode<synchronous>, transform_indices = @transform_4, window_bounds = array<i64: 1, 128>}, {pipeline_mode = #tpu.pipeline_mode<synchronous>, transform_indices = @transform_5, window_bounds = array<i64: 128, 8>}, {pipeline_mode = #tpu.pipeline_mode<synchronous>, transform_indices = @transform_6, window_bounds = array<i64: 1, 8>}, {transform_indices = @transform_7, window_bounds = array<i64: 8, 8>}]} {
    %c0 = arith.constant 0 : index
    %c0_0 = arith.constant 0 : index
    %0 = vector.load %arg1[%c0, %c0_0] : memref<8x16xf32, #tpu.memory_space<vmem>>, vector<8x16xf32>
    %c0_1 = arith.constant 0 : index
    %c0_2 = arith.constant 0 : index
    %1 = vector.load %arg2[%c0_1, %c0_2] : memref<16x128xf32, #tpu.memory_space<vmem>>, vector<16x128xf32>
    %cst = arith.constant dense<0.000000e+00> : vector<8x128xf32>
    %2 = tpu.matmul %0, %1, %cst {dimension_numbers = #tpu.dot_dimension_numbers<[1], [0], [0], [1], [0, 0, 1, 1], [], []>} : vector<8x16xf32>, vector<16x128xf32>, vector<8x128xf32> -> vector<8x128xf32>
    %c0_3 = arith.constant 0 : index
    %c0_4 = arith.constant 0 : index
    %3 = vector.load %arg3[%c0_3, %c0_4] : memref<1x128xf32, #tpu.memory_space<vmem>>, vector<1x128xf32>
    %4 = vector.broadcast %3 : vector<1x128xf32> to vector<8x128xf32>
    %5 = arith.addf %2, %4 : vector<8x128xf32>
    %cst_5 = arith.constant 0.000000e+00 : f32
    %6 = vector.broadcast %cst_5 : f32 to vector<8x128xf32>
    %7 = arith.maximumf %5, %6 : vector<8x128xf32>
    %c0_6 = arith.constant 0 : index
    %c0_7 = arith.constant 0 : index
    %8 = vector.load %arg4[%c0_6, %c0_7] : memref<128x128xf32, #tpu.memory_space<vmem>>, vector<128x128xf32>
    %cst_8 = arith.constant dense<0.000000e+00> : vector<8x128xf32>
    %9 = tpu.matmul %7, %8, %cst_8 {dimension_numbers = #tpu.dot_dimension_numbers<[1], [0], [0], [1], [0, 0, 1, 1], [], []>} : vector<8x128xf32>, vector<128x128xf32>, vector<8x128xf32> -> vector<8x128xf32>
    %c0_9 = arith.constant 0 : index
    %c0_10 = arith.constant 0 : index
    %10 = vector.load %arg5[%c0_9, %c0_10] : memref<1x128xf32, #tpu.memory_space<vmem>>, vector<1x128xf32>
    %11 = vector.broadcast %10 : vector<1x128xf32> to vector<8x128xf32>
    %12 = arith.addf %9, %11 : vector<8x128xf32>
    %cst_11 = arith.constant 0.000000e+00 : f32
    %13 = vector.broadcast %cst_11 : f32 to vector<8x128xf32>
    %14 = arith.maximumf %12, %13 : vector<8x128xf32>
    %c0_12 = arith.constant 0 : index
    %c0_13 = arith.constant 0 : index
    %15 = vector.load %arg6[%c0_12, %c0_13] : memref<128x8xf32, #tpu.memory_space<vmem>>, vector<128x8xf32>
    %cst_14 = arith.constant dense<0.000000e+00> : vector<8x8xf32>
    %16 = tpu.matmul %14, %15, %cst_14 {dimension_numbers = #tpu.dot_dimension_numbers<[1], [0], [0], [1], [0, 0, 1, 1], [], []>} : vector<8x128xf32>, vector<128x8xf32>, vector<8x8xf32> -> vector<8x8xf32>
    %c0_15 = arith.constant 0 : index
    %c0_16 = arith.constant 0 : index
    %17 = vector.load %arg7[%c0_15, %c0_16] : memref<1x8xf32, #tpu.memory_space<vmem>>, vector<1x8xf32>
    %18 = vector.broadcast %17 : vector<1x8xf32> to vector<8x8xf32>
    %19 = arith.addf %16, %18 : vector<8x8xf32>
    %c0_17 = arith.constant 0 : index
    %c0_18 = arith.constant 0 : index
    %20 = vector.load %arg8[%c0_17, %c0_18] : memref<8x8xf32, #tpu.memory_space<vmem>>, vector<8x8xf32>
    tpu.vector_store %arg8[%c0_17, %c0_18], %19 {strides = array<i32>} : memref<8x8xf32, #tpu.memory_space<vmem>>, vector<8x8xf32>,
    return
  }
  func.func @transform_0(%arg0: i32) -> (i32, i32) {
    %c0_i32 = arith.constant 0 : i32
    %c0_i32_0 = arith.constant 0 : i32
    return %arg0, %c0_i32 : i32, i32
  }
  func.func @transform_1(%arg0: i32) -> (i32, i32) {
    %c0_i32 = arith.constant 0 : i32
    %c0_i32_0 = arith.constant 0 : i32
    %c0_i32_1 = arith.constant 0 : i32
    return %c0_i32, %c0_i32_0 : i32, i32
  }
  func.func @transform_2(%arg0: i32) -> (i32, i32) {
    %c0_i32 = arith.constant 0 : i32
    %c0_i32_0 = arith.constant 0 : i32
    %c0_i32_1 = arith.constant 0 : i32
    return %c0_i32, %c0_i32_0 : i32, i32
  }
  func.func @transform_3(%arg0: i32) -> (i32, i32) {
    %c0_i32 = arith.constant 0 : i32
    %c0_i32_0 = arith.constant 0 : i32
    %c0_i32_1 = arith.constant 0 : i32
    return %c0_i32, %c0_i32_0 : i32, i32
  }
  func.func @transform_4(%arg0: i32) -> (i32, i32) {
    %c0_i32 = arith.constant 0 : i32
    %c0_i32_0 = arith.constant 0 : i32
    %c0_i32_1 = arith.constant 0 : i32
    return %c0_i32, %c0_i32_0 : i32, i32
  }
  func.func @transform_5(%arg0: i32) -> (i32, i32) {
    %c0_i32 = arith.constant 0 : i32
    %c0_i32_0 = arith.constant 0 : i32
    %c0_i32_1 = arith.constant 0 : i32
    return %c0_i32, %c0_i32_0 : i32, i32
  }
  func.func @transform_6(%arg0: i32) -> (i32, i32) {
    %c0_i32 = arith.constant 0 : i32
    %c0_i32_0 = arith.constant 0 : i32
    %c0_i32_1 = arith.constant 0 : i32
    return %c0_i32, %c0_i32_0 : i32, i32
  }
  func.func @transform_7(%arg0: i32) -> (i32, i32) {
    %c0_i32 = arith.constant 0 : i32
    %c0_i32_0 = arith.constant 0 : i32
    return %arg0, %c0_i32 : i32, i32
  }
}

</mosaic_0001>

<llo_original>
// kernel: dq_network_forward.1
$region0: #{dq_network_forward.1}
  #allocation0 [shape = 'u32[]', space=smem, size = 0x4, offset = 0x4, fixed_abs, tag = 'smem constant byte address 0x4 - core index']
  #allocation1 [shape = 'u32[72,128]{1,0:T(1,128)}', space=vmem, size = 0x9000, scoped, tag = 'internal scratch']
  %s0 = inlined_call_operand.vmem [shape: f32[8,16], index: 0, kind: input, shape index: {}]
  %s1 = inlined_call_operand.hbm [shape: f32[16,128], index: 1, kind: input, shape index: {}]
  %s2 = inlined_call_operand.vmem [shape: f32[1,128], index: 2, kind: input, shape index: {}]
  %s3 = inlined_call_operand.vmem [shape: f32[128,128], index: 3, kind: input, shape index: {}]
  %s4 = inlined_call_operand.vmem [shape: f32[1,128], index: 4, kind: input, shape index: {}]
  %s5 = inlined_call_operand.vmem [shape: f32[128,8], index: 5, kind: input, shape index: {}]
  %s6 = inlined_call_operand.vmem [shape: f32[1,8], index: 6, kind: input, shape index: {}]
  %s7 = inlined_call_operand.hbm [shape: f32[8,8], index: 7, kind: output, shape index: {}]
  %s8 = sld [smem:[#allocation0]]
  $region42: #{dq_network_forward.1} parent=0
    _
  %s10 = ssub.s32 1, %s8
  %s11 = scalar_select 0, %s10, %s8
  $region1: #{dq_network_forward.1} parent=0
    #allocation2 [shape = 'u8[8192]{0}', space=vmem, size = 0x2000, scoped, tag = 'input window, operand 1, single buffered']
    #allocation3 [shape = 's32[1]{0}', space=sflag, size = 0x4, scoped, tag = 'scoped memory for dq_network_forward.1']
    #allocation4 [shape = 's32[1]{0}', space=sflag, size = 0x4, scoped, tag = 'scoped memory for dq_network_forward.1']
    #allocation5 [shape = 'u8[4096]{0}', space=vmem, size = 0x1000, scoped, tag = 'output window, operand 0, single buffered']
    %12 = vsyncpa [#allocation3], 0
    %13 = vsyncpa [#allocation4], 0
    // Predicated region
    $region2: #{dq_network_forward.1} parent=1 // pred_check
      _
    $region3: #{dq_network_forward.1} parent=1 // pred_check_branch
      %15 = sbr.rel (0) target = $region5
    $region4: #{dq_network_forward.1} parent=1 // pred_region
      _
    $region5: #{dq_network_forward.1} parent=1 // pred_fallthru
      _
    // Predicated region
    $region6: #{dq_network_forward.1} parent=1 // pred_check
      _
    $region7: #{dq_network_forward.1} parent=1 // pred_check_branch
      %17 = sbr.rel (0) target = $region9
    $region8: #{dq_network_forward.1} parent=1 // pred_region
      %19 = vsyncadd [#allocation3], 0
      %s20 = sshll.u32 %s1, 4
      %s21 = int_to_ptr.hbm [resolvable:$true] %s20
      %s22 = sshll.u32 [#allocation2], 4
      %s23 = int_to_ptr.vmem [resolvable:$true] %s22
      %28 = dma.hbm_to_vmem [thread:$0]  %s21, 256, %s23, [#allocation3], 128, 128, 8
    $region9: #{dq_network_forward.1} parent=1 // pred_fallthru
      _
    // Predicated region
    $region10: #{dq_network_forward.1} parent=1 // pred_check
      _
    $region11: #{dq_network_forward.1} parent=1 // pred_check_branch
      %30 = sbr.rel (0) target = $region13
    $region12: #{dq_network_forward.1} parent=1 // pred_region
      _
    $region13: #{dq_network_forward.1} parent=1 // pred_fallthru
      _
    // Predicated region
    $region14: #{dq_network_forward.1} parent=1 // pred_check
      _
    $region15: #{dq_network_forward.1} parent=1 // pred_check_branch
      %32 = sbr.rel (0) target = $region17
    $region16: #{dq_network_forward.1} parent=1 // pred_region
      _
    $region17: #{dq_network_forward.1} parent=1 // pred_fallthru
      _
    // Predicated region
    $region18: #{dq_network_forward.1} parent=1 // pred_check
      _
    $region19: #{dq_network_forward.1} parent=1 // pred_check_branch
      %34 = sbr.rel (0) target = $region21
    $region20: #{dq_network_forward.1} parent=1 // pred_region
      _
    $region21: #{dq_network_forward.1} parent=1 // pred_fallthru
      _
    // Predicated region
    $region22: #{dq_network_forward.1} parent=1 // pred_check
      _
    $region23: #{dq_network_forward.1} parent=1 // pred_check_branch
      %36 = sbr.rel (0) target = $region25
    $region24: #{dq_network_forward.1} parent=1 // pred_region
      _
    $region25: #{dq_network_forward.1} parent=1 // pred_fallthru
      _
    // Predicated region
    $region26: #{dq_network_forward.1} parent=1 // pred_check
      _
    $region27: #{dq_network_forward.1} parent=1 // pred_check_branch
      %38 = sbr.rel (0) target = $region29
    $region28: #{dq_network_forward.1} parent=1 // pred_region
      _
    $region29: #{dq_network_forward.1} parent=1 // pred_fallthru
      _
    // Predicated region
    $region30: #{dq_network_forward.1} parent=1 // pred_check
      _
    $region31: #{dq_network_forward.1} parent=1 // pred_check_branch
      %40 = sbr.rel (0) target = $region33
    $region32: #{dq_network_forward.1} parent=1 // pred_region
      %42 = dma.done [#allocation3], 256
    $region33: #{dq_network_forward.1} parent=1 // pred_fallthru
      _
    %v43 = vld [vmem:[%s0] sm:$0xff]
    %v44 = vld [vmem:[#allocation2] sm:$0xff]
    %v45 = vld [vmem:[#allocation2 + $0x8] sm:$0xff]
    %v46 = vld [vmem:[%s2] sm:$0x1]
    %v48 = vperm.slane %v46, 0
    %vm50 = vcmask 130048
    %v52 = vsel %vm50, %v43, 0
    %54 = vmatpush.msra.mxu0 0.0
    %55 = vmatpush.msra.mxu0 0.0
    %56 = vmatpush.msra.mxu0 0.0
    %57 = vmatpush.msra.mxu0 0.0
    %58 = vmatpush.msra.mxu0 0.0
    %59 = vmatpush.msra.mxu0 0.0
    %60 = vmatpush.msra.mxu0 0.0
    %61 = vmatpush.msra.mxu0 0.0
    %62 = vmatpush.msra.mxu0 0.0
    %63 = vmatpush.msra.mxu0 0.0
    %64 = vmatpush.msra.mxu0 0.0
    %65 = vmatpush.msra.mxu0 0.0
    %66 = vmatpush.msra.mxu0 0.0
    %67 = vmatpush.msra.mxu0 0.0
    %68 = vmatpush.msra.mxu0 %v45
    %69 = vmatpush.msra.mxu0 %v44
    %70 = vmatmul.f32.gmra.mxu0 %v52
    %v71 = vpop.f32.mrf.mxu0
    %v72 = vadd.f32 %v48, %v71
    %73 = vdwg.mxu0
    %v74 = vmax.f32 %v72, 0.0
    %v75 = vld [vmem:[%s3] sm:$0xff]
    %v76 = vld [vmem:[%s3 + $0x8] sm:$0xff]
    %v77 = vld [vmem:[%s3 + $0x10] sm:$0xff]
    %v78 = vld [vmem:[%s3 + $0x18] sm:$0xff]
    %v79 = vld [vmem:[%s3 + $0x20] sm:$0xff]
    %v80 = vld [vmem:[%s3 + $0x28] sm:$0xff]
    %v81 = vld [vmem:[%s3 + $0x30] sm:$0xff]
    %v82 = vld [vmem:[%s3 + $0x38] sm:$0xff]
    %v83 = vld [vmem:[%s3 + $0x40] sm:$0xff]
    %v84 = vld [vmem:[%s3 + $0x48] sm:$0xff]
    %v85 = vld [vmem:[%s3 + $0x50] sm:$0xff]
    %v86 = vld [vmem:[%s3 + $0x58] sm:$0xff]
    %v87 = vld [vmem:[%s3 + $0x60] sm:$0xff]
    %v88 = vld [vmem:[%s3 + $0x68] sm:$0xff]
    %v89 = vld [vmem:[%s3 + $0x70] sm:$0xff]
    %v90 = vld [vmem:[%s3 + $0x78] sm:$0xff]
    %v91 = vld [vmem:[%s4] sm:$0x1]
    %v93 = vperm.slane %v91, 0
    %95 = vmatpush.msra.mxu0 %v90
    %96 = vmatpush.msra.mxu0 %v89
    %97 = vmatpush.msra.mxu0 %v88
    %98 = vmatpush.msra.mxu0 %v87
    %99 = vmatpush.msra.mxu0 %v86
    %100 = vmatpush.msra.mxu0 %v85
    %101 = vmatpush.msra.mxu0 %v84
    %102 = vmatpush.msra.mxu0 %v83
    %103 = vmatpush.msra.mxu0 %v82
    %104 = vmatpush.msra.mxu0 %v81
    %105 = vmatpush.msra.mxu0 %v80
    %106 = vmatpush.msra.mxu0 %v79
    %107 = vmatpush.msra.mxu0 %v78
    %108 = vmatpush.msra.mxu0 %v77
    %109 = vmatpush.msra.mxu0 %v76
    %110 = vmatpush.msra.mxu0 %v75
    %111 = vmatmul.f32.gmra.mxu0 %v74
    %v112 = vpop.f32.mrf.mxu0
    %v113 = vadd.f32 %v93, %v112
    %114 = vdwg.mxu0
    %v115 = vmax.f32 %v113, 0.0
    %v116 = vld [vmem:[%s5] sm:$0xff]
    %v117 = vld [vmem:[%s5 + $0x8] sm:$0xff]
    %v118 = vld [vmem:[%s5 + $0x10] sm:$0xff]
    %v119 = vld [vmem:[%s5 + $0x18] sm:$0xff]
    %v120 = vld [vmem:[%s5 + $0x20] sm:$0xff]
    %v121 = vld [vmem:[%s5 + $0x28] sm:$0xff]
    %v122 = vld [vmem:[%s5 + $0x30] sm:$0xff]
    %v123 = vld [vmem:[%s5 + $0x38] sm:$0xff]
    %v124 = vld [vmem:[%s5 + $0x40] sm:$0xff]
    %v125 = vld [vmem:[%s5 + $0x48] sm:$0xff]
    %v126 = vld [vmem:[%s5 + $0x50] sm:$0xff]
    %v127 = vld [vmem:[%s5 + $0x58] sm:$0xff]
    %v128 = vld [vmem:[%s5 + $0x60] sm:$0xff]
    %v129 = vld [vmem:[%s5 + $0x68] sm:$0xff]
    %v130 = vld [vmem:[%s5 + $0x70] sm:$0xff]
    %v131 = vld [vmem:[%s5 + $0x78] sm:$0xff]
    %v132 = vld [vmem:[%s6] sm:$0x1]
    %v134 = vperm.slane %v132, 0
    %136 = vmatpush.msra.mxu0 %v131
    %137 = vmatpush.msra.mxu0 %v130
    %138 = vmatpush.msra.mxu0 %v129
    %139 = vmatpush.msra.mxu0 %v128
    %140 = vmatpush.msra.mxu0 %v127
    %141 = vmatpush.msra.mxu0 %v126
    %142 = vmatpush.msra.mxu0 %v125
    %143 = vmatpush.msra.mxu0 %v124
    %144 = vmatpush.msra.mxu0 %v123
    %145 = vmatpush.msra.mxu0 %v122
    %146 = vmatpush.msra.mxu0 %v121
    %147 = vmatpush.msra.mxu0 %v120
    %148 = vmatpush.msra.mxu0 %v119
    %149 = vmatpush.msra.mxu0 %v118
    %150 = vmatpush.msra.mxu0 %v117
    %151 = vmatpush.msra.mxu0 %v116
    %152 = vmatmul.f32.gmra.mxu0 %v115
    %v153 = vpop.f32.mrf.mxu0
    %v154 = vadd.f32 %v134, %v153
    %155 = vdwg.mxu0
    %vm156 = vcmask 64512
    %157 = vst.msk [vmem:[#allocation5] sm:$0xff] %vm156, %v154
    // Predicated region
    $region34: #{dq_network_forward.1} parent=1 // pred_check
      _
    $region35: #{dq_network_forward.1} parent=1 // pred_check_branch
      %159 = sbr.rel (0) target = $region37
    $region36: #{dq_network_forward.1} parent=1 // pred_region
      %161 = vsyncadd [#allocation4], 0
      %s163 = sshll.u32 [#allocation5], 4
      %s164 = int_to_ptr.vmem [resolvable:$true] %s163
      %s165 = sshll.u32 %s7, 4
      %s166 = int_to_ptr.hbm [resolvable:$true] %s165
      %168 = dma.vmem_to_hbm [thread:$0]  %s164, 128, %s166, [#allocation4]
    $region37: #{dq_network_forward.1} parent=1 // pred_fallthru
      _
    // Predicated region
    $region38: #{dq_network_forward.1} parent=1 // pred_check
      _
    $region39: #{dq_network_forward.1} parent=1 // pred_check_branch
      %170 = sbr.rel (0) target = $region41
    $region40: #{dq_network_forward.1} parent=1 // pred_region
      %172 = dma.done [#allocation4], 128
    $region41: #{dq_network_forward.1} parent=1 // pred_fallthru
      _
    %173 = vsyncpa [#allocation3], 1
    %174 = vsyncpa [#allocation4], 1

</llo_original>
